<compile_context>
chip_gen: v7x
topology: tpu7x:2x2x1
jax: 0.10.0
libtpu: 0.0.40
codegen_flags: <defaults>
</compile_context>

<pallas_src>
import functools

import jax
import jax.numpy as jnp
import numpy as np
from jax.experimental import pallas as pl
from jax.experimental.pallas import tpu as pltpu


def _round_up(v: int, m: int) -> int:
    return (v + m - 1) // m * m


def _fused_gine_kernel(x0_ref, ea_ref, src_ref, dst_ref,
                       we_ref, be_ref, wn_ref, bn_ref,
                       o_ref, x_carry, e_lin, *, eps: float):
    """One grid step == one GINEConv layer. State carried in VMEM scratch."""
    layer = pl.program_id(0)
    is_last = layer == pl.num_programs(0) - 1

    # Layer 0: seed the node-state carry and compute the loop-invariant
    # edge embedding once.
    @pl.when(layer == 0)
    def _():
        e_lin[...] = (jnp.dot(ea_ref[...], we_ref[...],
                              preferred_element_type=jnp.float32)
                      + be_ref[...])                                   # [E, H]
        x_carry[...] = x0_ref[...]                                     # [N, H]

    x = x_carry[...]                                                   # [N, H] f32

    # bf16 one-hots (exact 0/1) -> f32 for exact accumulation on the MXU.
    src_oh = src_ref[...].astype(jnp.float32)                          # [E, N]
    dst_oh = dst_ref[...].astype(jnp.float32)                          # [E, N]

    # Gather x at source nodes via incidence matmul.
    x_src = jnp.dot(src_oh, x, preferred_element_type=jnp.float32)     # [E, H]
    msg = jnp.maximum(x_src + e_lin[...], 0.0)                         # [E, H]

    # Scatter-add to destination nodes: contract dim 0 (edges) of the
    # un-transposed [E, N] one-hot against dim 0 of msg -> [N, H].
    agg = jax.lax.dot_general(
        dst_oh, msg,
        dimension_numbers=(((0,), (0,)), ((), ())),
        preferred_element_type=jnp.float32)                            # [N, H]

    h = (1.0 + eps) * x + agg
    out = (jnp.dot(h, wn_ref[...], preferred_element_type=jnp.float32)
           + bn_ref[...])                                              # [N, H]

    # ReLU'd value is the carry for the next layer (unused after last layer);
    # the raw (non-ReLU) output of the last layer is the kernel result.
    x_carry[...] = jnp.maximum(out, 0.0)

    @pl.when(is_last)
    def _():
        o_ref[...] = out


def gnn_forward(x, edge_index, edge_attr, params, *, num_layers, eps=0.0):
    """GNN.forward: shared GINEConv applied num_layers times; ReLU on all but last."""
    N, H = x.shape
    E = edge_index.shape[1]
    D = edge_attr.shape[1]

    # Pad: sublane (8) on N/E, lane (128) on the hidden dim for lane-dense stores.
    N_pad = _round_up(N, 8)
    E_pad = _round_up(E, 8)
    H_pad = _round_up(H, 128)

    src = edge_index[0].astype(jnp.int32)
    dst = edge_index[1].astype(jnp.int32)
    # Padded edges: src -> node 0 (harmless), dst -> -1 (all-zero one-hot row,
    # so they never contribute to the scatter-add).
    src_p = jnp.pad(src, (0, E_pad - E), constant_values=0)
    dst_p = jnp.pad(dst, (0, E_pad - E), constant_values=-1)
    src_oh = jax.nn.one_hot(src_p, N_pad, dtype=jnp.bfloat16)          # [E_pad, N_pad]
    dst_oh = jax.nn.one_hot(dst_p, N_pad, dtype=jnp.bfloat16)          # [E_pad, N_pad]

    x_p = jnp.pad(x.astype(jnp.float32), ((0, N_pad - N), (0, H_pad - H)))
    ea_p = jnp.pad(edge_attr.astype(jnp.float32), ((0, E_pad - E), (0, 0)))

    w_e_t = jnp.pad(params["w_e"].T.astype(jnp.float32), ((0, 0), (0, H_pad - H)))   # [D, H_pad]
    b_e = jnp.pad(params["b_e"].astype(jnp.float32), (0, H_pad - H))[None, :]        # [1, H_pad]
    w_nn_t = jnp.pad(params["w_nn"].T.astype(jnp.float32),
                     ((0, H_pad - H), (0, H_pad - H)))                                # [H_pad, H_pad]
    b_nn = jnp.pad(params["b_nn"].astype(jnp.float32), (0, H_pad - H))[None, :]       # [1, H_pad]

    kernel = functools.partial(_fused_gine_kernel, eps=float(eps))
    const2 = lambda l: (0, 0)   # constant block index => resident across layers

    out = pl.pallas_call(
        kernel,
        out_shape=jax.ShapeDtypeStruct((N_pad, H_pad), jnp.float32),
        grid_spec=pltpu.PrefetchScalarGridSpec(
            num_scalar_prefetch=0,
            grid=(num_layers,),
            in_specs=[
                pl.BlockSpec((N_pad, H_pad), const2),   # x0
                pl.BlockSpec((E_pad, D), const2),       # edge_attr
                pl.BlockSpec((E_pad, N_pad), const2),   # src one-hot (bf16)
                pl.BlockSpec((E_pad, N_pad), const2),   # dst one-hot (bf16)
                pl.BlockSpec((D, H_pad), const2),       # W_e^T
                pl.BlockSpec((1, H_pad), const2),       # b_e
                pl.BlockSpec((H_pad, H_pad), const2),   # W_nn^T
                pl.BlockSpec((1, H_pad), const2),       # b_nn
            ],
            out_specs=pl.BlockSpec((N_pad, H_pad), const2),
            scratch_shapes=[
                pltpu.VMEM((N_pad, H_pad), jnp.float32),   # node-state carry
                pltpu.VMEM((E_pad, H_pad), jnp.float32),   # loop-invariant e_lin
            ]),
        compiler_params=pltpu.CompilerParams(
            dimension_semantics=("arbitrary",),      # layers are sequentially dependent
            vmem_limit_bytes=48 * 1024 * 1024),      # explicit; safe on v5e/v6e/v7x
    )(x_p, ea_p, src_oh, dst_oh, w_e_t, b_e, w_nn_t, b_nn)

    return out[:N, :H]


def gnn_forward_ref(x, edge_index, edge_attr, params, *, num_layers, eps=0.0):
    """Pure-JAX reference for correctness checking."""
    src, dst = edge_index[0], edge_index[1]
    N = x.shape[0]
    e_lin = edge_attr @ params["w_e"].T + params["b_e"]
    for i in range(num_layers):
        msg = jax.nn.relu(x[src] + e_lin)
        agg = jax.ops.segment_sum(msg, dst, num_segments=N)
        out = ((1.0 + eps) * x + agg) @ params["w_nn"].T + params["b_nn"]
        x = jax.nn.relu(out) if i != num_layers - 1 else out
    return x


if __name__ == "__main__":
    # Small shapes consistent with the module:
    # hidden_channels=32, edge_dim=8, num_layers=2, model_type='GINE'
    N, E, H, D = 16, 24, 32, 8
    num_layers = 2
    eps = 0.0  # GINEConv default (train_eps=False, eps=0)

    key = jax.random.PRNGKey(0)
    k_x, k_src, k_dst, k_ea, k_we, k_be, k_wn, k_bn = jax.random.split(key, 8)

    x = jax.random.normal(k_x, (N, H), dtype=jnp.float32)
    edge_index = jnp.stack([
        jax.random.randint(k_src, (E,), 0, N),
        jax.random.randint(k_dst, (E,), 0, N),
    ]).astype(jnp.int32)
    edge_attr = jax.random.normal(k_ea, (E, D), dtype=jnp.float32)

    params = {
        "w_e": 0.1 * jax.random.normal(k_we, (H, D), dtype=jnp.float32),   # Linear(D, H).weight
        "b_e": 0.1 * jax.random.normal(k_be, (H,), dtype=jnp.float32),
        "w_nn": 0.1 * jax.random.normal(k_wn, (H, H), dtype=jnp.float32),  # Linear(H, H).weight
        "b_nn": 0.1 * jax.random.normal(k_bn, (H,), dtype=jnp.float32),
    }

    out = gnn_forward(x, edge_index, edge_attr, params,
                      num_layers=num_layers, eps=eps)
    out = jax.block_until_ready(out)

    ref = gnn_forward_ref(x, edge_index, edge_attr, params,
                          num_layers=num_layers, eps=eps)
    np.testing.assert_allclose(np.asarray(out), np.asarray(ref),
                               rtol=1e-4, atol=1e-4)
    print("KERNEL_OK")
</pallas_src>

<mosaic_0001>
module attributes {stable_mosaic.version = 11 : i64} {
  func.func @_fused_gine_kernel(%arg0: i32, %arg1: memref<16x128xf32, #tpu.memory_space<vmem>>, %arg2: memref<24x8xf32, #tpu.memory_space<vmem>>, %arg3: memref<24x16xbf16, #tpu.memory_space<vmem>>, %arg4: memref<24x16xbf16, #tpu.memory_space<vmem>>, %arg5: memref<8x128xf32, #tpu.memory_space<vmem>>, %arg6: memref<1x128xf32, #tpu.memory_space<vmem>>, %arg7: memref<128x128xf32, #tpu.memory_space<vmem>>, %arg8: memref<1x128xf32, #tpu.memory_space<vmem>>, %arg9: memref<16x128xf32, #tpu.memory_space<vmem>>, %arg10: memref<16x128xf32, #tpu.memory_space<vmem>>, %arg11: memref<24x128xf32, #tpu.memory_space<vmem>>) attributes {dimension_semantics = [#tpu.dimension_semantics<arbitrary>], iteration_bounds = array<i64: 2>, scalar_prefetch = 0 : i64, scratch_operands = 2 : i64, tpu.core_type = #tpu.core_type<tc>, window_params = [{pipeline_mode = #tpu.pipeline_mode<synchronous>, transform_indices = @transform_0, window_bounds = array<i64: 16, 128>}, {pipeline_mode = #tpu.pipeline_mode<synchronous>, transform_indices = @transform_1, window_bounds = array<i64: 24, 8>}, {pipeline_mode = #tpu.pipeline_mode<synchronous>, transform_indices = @transform_2, window_bounds = array<i64: 24, 16>}, {pipeline_mode = #tpu.pipeline_mode<synchronous>, transform_indices = @transform_3, window_bounds = array<i64: 24, 16>}, {pipeline_mode = #tpu.pipeline_mode<synchronous>, transform_indices = @transform_4, window_bounds = array<i64: 8, 128>}, {pipeline_mode = #tpu.pipeline_mode<synchronous>, transform_indices = @transform_5, window_bounds = array<i64: 1, 128>}, {pipeline_mode = #tpu.pipeline_mode<synchronous>, transform_indices = @transform_6, window_bounds = array<i64: 128, 128>}, {pipeline_mode = #tpu.pipeline_mode<synchronous>, transform_indices = @transform_7, window_bounds = array<i64: 1, 128>}, {pipeline_mode = #tpu.pipeline_mode<synchronous>, transform_indices = @transform_8, window_bounds = array<i64: 16, 128>}]} {
    %c1_i32 = arith.constant 1 : i32
    %0 = arith.cmpi eq, %arg0, %c1_i32 : i32
    %c0_i32 = arith.constant 0 : i32
    %1 = arith.cmpi eq, %arg0, %c0_i32 : i32
    %2 = arith.extui %1 : i1 to i32
    %c0_i32_0 = arith.constant 0 : i32
    %3 = arith.cmpi ne, %2, %c0_i32_0 : i32
    scf.if %3 {
      %c0_20 = arith.constant 0 : index
      %c0_21 = arith.constant 0 : index
      %28 = vector.load %arg2[%c0_20, %c0_21] : memref<24x8xf32, #tpu.memory_space<vmem>>, vector<24x8xf32>
      %c0_22 = arith.constant 0 : index
      %c0_23 = arith.constant 0 : index
      %29 = vector.load %arg5[%c0_22, %c0_23] : memref<8x128xf32, #tpu.memory_space<vmem>>, vector<8x128xf32>
      %cst_24 = arith.constant dense<0.000000e+00> : vector<24x128xf32>
      %30 = tpu.matmul %28, %29, %cst_24 {dimension_numbers = #tpu.dot_dimension_numbers<[1], [0], [0], [1], [0, 0, 1, 1], [], []>} : vector<24x8xf32>, vector<8x128xf32>, vector<24x128xf32> -> vector<24x128xf32>
      %c0_25 = arith.constant 0 : index
      %c0_26 = arith.constant 0 : index
      %31 = vector.load %arg6[%c0_25, %c0_26] : memref<1x128xf32, #tpu.memory_space<vmem>>, vector<1x128xf32>
      %32 = vector.broadcast %31 : vector<1x128xf32> to vector<24x128xf32>
      %33 = arith.addf %30, %32 : vector<24x128xf32>
      %c0_27 = arith.constant 0 : index
      %c0_28 = arith.constant 0 : index
      %34 = vector.load %arg11[%c0_27, %c0_28] : memref<24x128xf32, #tpu.memory_space<vmem>>, vector<24x128xf32>
      tpu.vector_store %arg11[%c0_27, %c0_28], %33 {strides = array<i32>} : memref<24x128xf32, #tpu.memory_space<vmem>>, vector<24x128xf32>,
      %c0_29 = arith.constant 0 : index
      %c0_30 = arith.constant 0 : index
      %35 = vector.load %arg1[%c0_29, %c0_30] : memref<16x128xf32, #tpu.memory_space<vmem>>, vector<16x128xf32>
      %c0_31 = arith.constant 0 : index
      %c0_32 = arith.constant 0 : index
      %36 = vector.load %arg10[%c0_31, %c0_32] : memref<16x128xf32, #tpu.memory_space<vmem>>, vector<16x128xf32>
      tpu.vector_store %arg10[%c0_31, %c0_32], %35 {strides = array<i32>} : memref<16x128xf32, #tpu.memory_space<vmem>>, vector<16x128xf32>,
    } else {
    }
    %c0 = arith.constant 0 : index
    %c0_1 = arith.constant 0 : index
    %4 = vector.load %arg10[%c0, %c0_1] : memref<16x128xf32, #tpu.memory_space<vmem>>, vector<16x128xf32>
    %c0_2 = arith.constant 0 : index
    %c0_3 = arith.constant 0 : index
    %5 = vector.load %arg3[%c0_2, %c0_3] : memref<24x16xbf16, #tpu.memory_space<vmem>>, vector<24x16xbf16>
    %6 = arith.extf %5 : vector<24x16xbf16> to vector<24x16xf32>
    %c0_4 = arith.constant 0 : index
    %c0_5 = arith.constant 0 : index
    %7 = vector.load %arg4[%c0_4, %c0_5] : memref<24x16xbf16, #tpu.memory_space<vmem>>, vector<24x16xbf16>
    %8 = arith.extf %7 : vector<24x16xbf16> to vector<24x16xf32>
    %cst = arith.constant dense<0.000000e+00> : vector<24x128xf32>
    %9 = tpu.matmul %6, %4, %cst {dimension_numbers = #tpu.dot_dimension_numbers<[1], [0], [0], [1], [0, 0, 1, 1], [], []>} : vector<24x16xf32>, vector<16x128xf32>, vector<24x128xf32> -> vector<24x128xf32>
    %c0_6 = arith.constant 0 : index
    %c0_7 = arith.constant 0 : index
    %10 = vector.load %arg11[%c0_6, %c0_7] : memref<24x128xf32, #tpu.memory_space<vmem>>, vector<24x128xf32>
    %11 = arith.addf %9, %10 : vector<24x128xf32>
    %cst_8 = arith.constant 0.000000e+00 : f32
    %12 = vector.broadcast %cst_8 : f32 to vector<24x128xf32>
    %13 = arith.maximumf %11, %12 : vector<24x128xf32>
    %cst_9 = arith.constant dense<0.000000e+00> : vector<16x128xf32>
    %14 = tpu.matmul %8, %13, %cst_9 {dimension_numbers = #tpu.dot_dimension_numbers<[0], [0], [1], [1], [0, 1, 1, 1], [], []>} : vector<24x16xf32>, vector<24x128xf32>, vector<16x128xf32> -> vector<16x128xf32>
    %cst_10 = arith.constant 1.000000e+00 : f32
    %15 = vector.broadcast %cst_10 : f32 to vector<16x128xf32>
    %16 = arith.mulf %15, %4 : vector<16x128xf32>
    %17 = arith.addf %16, %14 : vector<16x128xf32>
    %c0_11 = arith.constant 0 : index
    %c0_12 = arith.constant 0 : index
    %18 = vector.load %arg7[%c0_11, %c0_12] : memref<128x128xf32, #tpu.memory_space<vmem>>, vector<128x128xf32>
    %cst_13 = arith.constant dense<0.000000e+00> : vector<16x128xf32>
    %19 = tpu.matmul %17, %18, %cst_13 {dimension_numbers = #tpu.dot_dimension_numbers<[1], [0], [0], [1], [0, 0, 1, 1], [], []>} : vector<16x128xf32>, vector<128x128xf32>, vector<16x128xf32> -> vector<16x128xf32>
    %c0_14 = arith.constant 0 : index
    %c0_15 = arith.constant 0 : index
    %20 = vector.load %arg8[%c0_14, %c0_15] : memref<1x128xf32, #tpu.memory_space<vmem>>, vector<1x128xf32>
    %21 = vector.broadcast %20 : vector<1x128xf32> to vector<16x128xf32>
    %22 = arith.addf %19, %21 : vector<16x128xf32>
    %cst_16 = arith.constant 0.000000e+00 : f32
    %23 = vector.broadcast %cst_16 : f32 to vector<16x128xf32>
    %24 = arith.maximumf %22, %23 : vector<16x128xf32>
    %c0_17 = arith.constant 0 : index
    %c0_18 = arith.constant 0 : index
    %25 = vector.load %arg10[%c0_17, %c0_18] : memref<16x128xf32, #tpu.memory_space<vmem>>, vector<16x128xf32>
    tpu.vector_store %arg10[%c0_17, %c0_18], %24 {strides = array<i32>} : memref<16x128xf32, #tpu.memory_space<vmem>>, vector<16x128xf32>,
    %26 = arith.extui %0 : i1 to i32
    %c0_i32_19 = arith.constant 0 : i32
    %27 = arith.cmpi ne, %26, %c0_i32_19 : i32
    scf.if %27 {
      %c0_20 = arith.constant 0 : index
      %c0_21 = arith.constant 0 : index
      %28 = vector.load %arg9[%c0_20, %c0_21] : memref<16x128xf32, #tpu.memory_space<vmem>>, vector<16x128xf32>
      tpu.vector_store %arg9[%c0_20, %c0_21], %22 {strides = array<i32>} : memref<16x128xf32, #tpu.memory_space<vmem>>, vector<16x128xf32>,
    } else {
    }
    return
  }
  func.func @transform_0(%arg0: i32) -> (i32, i32) {
    %c0_i32 = arith.constant 0 : i32
    %c0_i32_0 = arith.constant 0 : i32
    %c0_i32_1 = arith.constant 0 : i32
    return %c0_i32, %c0_i32_0 : i32, i32
  }
  func.func @transform_1(%arg0: i32) -> (i32, i32) {
    %c0_i32 = arith.constant 0 : i32
    %c0_i32_0 = arith.constant 0 : i32
    %c0_i32_1 = arith.constant 0 : i32
    return %c0_i32, %c0_i32_0 : i32, i32
  }
  func.func @transform_2(%arg0: i32) -> (i32, i32) {
    %c0_i32 = arith.constant 0 : i32
    %c0_i32_0 = arith.constant 0 : i32
    %c0_i32_1 = arith.constant 0 : i32
    return %c0_i32, %c0_i32_0 : i32, i32
  }
  func.func @transform_3(%arg0: i32) -> (i32, i32) {
    %c0_i32 = arith.constant 0 : i32
    %c0_i32_0 = arith.constant 0 : i32
    %c0_i32_1 = arith.constant 0 : i32
    return %c0_i32, %c0_i32_0 : i32, i32
  }
  func.func @transform_4(%arg0: i32) -> (i32, i32) {
    %c0_i32 = arith.constant 0 : i32
    %c0_i32_0 = arith.constant 0 : i32
    %c0_i32_1 = arith.constant 0 : i32
    return %c0_i32, %c0_i32_0 : i32, i32
  }
  func.func @transform_5(%arg0: i32) -> (i32, i32) {
    %c0_i32 = arith.constant 0 : i32
    %c0_i32_0 = arith.constant 0 : i32
    %c0_i32_1 = arith.constant 0 : i32
    return %c0_i32, %c0_i32_0 : i32, i32
  }
  func.func @transform_6(%arg0: i32) -> (i32, i32) {
    %c0_i32 = arith.constant 0 : i32
    %c0_i32_0 = arith.constant 0 : i32
    %c0_i32_1 = arith.constant 0 : i32
    return %c0_i32, %c0_i32_0 : i32, i32
  }
  func.func @transform_7(%arg0: i32) -> (i32, i32) {
    %c0_i32 = arith.constant 0 : i32
    %c0_i32_0 = arith.constant 0 : i32
    %c0_i32_1 = arith.constant 0 : i32
    return %c0_i32, %c0_i32_0 : i32, i32
  }
  func.func @transform_8(%arg0: i32) -> (i32, i32) {
    %c0_i32 = arith.constant 0 : i32
    %c0_i32_0 = arith.constant 0 : i32
    %c0_i32_1 = arith.constant 0 : i32
    return %c0_i32, %c0_i32_0 : i32, i32
  }
}

</mosaic_0001>

<llo_original>
// kernel: tpu_custom_call.1
$region0: #{tpu_custom_call.1}
  #allocation0 [shape = 'u32[]', space=smem, size = 0x4, offset = 0x4, fixed_abs, tag = 'smem constant byte address 0x4 - core index']
  #allocation1 [shape = 'u32[144,128]{1,0:T(1,128)}', space=vmem, size = 0x12000, scoped, tag = 'internal scratch']
  #allocation2 [shape = 'f32[16,128]{1,0:T(8,128)}', space=vmem, size = 0x2000, scoped, tag = 'scratch operand']
  #allocation3 [shape = 'f32[24,128]{1,0:T(8,128)}', space=vmem, size = 0x3000, scoped, tag = 'scratch operand']
  %s0 = inlined_call_operand.vmem [shape: f32[16,128], index: 0, kind: input, shape index: {}]
  %s1 = inlined_call_operand.vmem [shape: f32[24,8], index: 1, kind: input, shape index: {}]
  %s2 = inlined_call_operand.vmem [shape: bf16[24,16], index: 2, kind: input, shape index: {}]
  %s3 = inlined_call_operand.vmem [shape: bf16[24,16], index: 3, kind: input, shape index: {}]
  %s4 = inlined_call_operand.vmem [shape: f32[8,128], index: 4, kind: input, shape index: {}]
  %s5 = inlined_call_operand.vmem [shape: f32[1,128], index: 5, kind: input, shape index: {}]
  %s6 = inlined_call_operand.hbm [shape: f32[128,128], index: 6, kind: input, shape index: {}]
  %s7 = inlined_call_operand.vmem [shape: f32[1,128], index: 7, kind: input, shape index: {}]
  %s8 = inlined_call_operand.hbm [shape: f32[16,128], index: 8, kind: output, shape index: {}]
  %s9 = sld [smem:[#allocation0]]
  $region77: #{tpu_custom_call.1} parent=0
    _
  %s11 = ssub.s32 1, %s9
  %s12 = scalar_select 0, %s11, %s9
  $region1: #{tpu_custom_call.1} parent=0
    #allocation4 [shape = 'u8[65536]{0}', space=vmem, size = 0x10000, scoped, tag = 'input window, operand 6, single buffered']
    #allocation5 [shape = 's32[2]{0}', space=sflag, size = 0x8, scoped, tag = 'scoped memory for tpu_custom_call.1']
    #allocation6 [shape = 's32[2]{0}', space=sflag, size = 0x8, scoped, tag = 'scoped memory for tpu_custom_call.1']
    #allocation7 [shape = 'u8[8192]{0}', space=vmem, size = 0x2000, scoped, tag = 'output window, operand 0, single buffered']
    %13 = vsyncpa [#allocation5], 0
    %14 = vsyncpa [#allocation6], 0
    loop: start=0, step=1, limit=4
    $region2: #{tpu_custom_call.1} parent=1 // loop_pre_header
      _
    $region3: #{tpu_custom_call.1} parent=1 // loop_header
      %s16 = sphi 0, %s20
      %p17 = scmp.ge.s32.totalorder %s16, 4
      %s24 = sphi 0, %s24
      %s26 = sphi 0, %s24
      %s27 = sphi 0, %s26
      %s41 = sphi 0, %s27
      %s45 = sphi 0, %s45
      %s47 = sphi 0, %s45
      %s48 = sphi 0, %s47
      %s62 = sphi 0, %s48
      %s66 = sphi 0, %s66
      %s68 = sphi 0, %s66
      %s69 = sphi 0, %s68
      %s83 = sphi 0, %s69
      %s87 = sphi 0, %s87
      %s89 = sphi 0, %s87
      %s90 = sphi 0, %s89
      %s104 = sphi 0, %s90
      %s108 = sphi 0, %s108
      %s110 = sphi 0, %s108
      %s111 = sphi 0, %s110
      %s125 = sphi 0, %s111
      %s129 = sphi 0, %s129
      %s131 = sphi 0, %s129
      %s132 = sphi 0, %s131
      %s146 = sphi 0, %s132
      %s150 = sphi 0, %s150
      %s152 = sphi 0, %s150
      %s153 = sphi 0, %s152
      %s167 = sphi 0, %s153
      %s171 = sphi 0, %s171
      %s173 = sphi 0, %s171
      %s174 = sphi 0, %s173
      %s188 = sphi 0, %s174
      %s192 = sphi 0, %s192
      %s194 = sphi 0, %s192
      %s195 = sphi 0, %s194
      %s209 = sphi 0, %s195
    $region4: #{tpu_custom_call.1} parent=1 // loop_header_branch
      %19 = sbr.rel (%p17) target = $region8
    $region5: #{tpu_custom_call.1} parent=1 // loop_body
      %s21 = ssub.s32 %s16, 1
      %s22 = ssub.s32 %s16, 2
      %s23 = sadd.s32 %s16, 1
      %s25 = sadd.s32 %s24, 1
      %p28 = scmp.eq.s32.totalorder %s16, 1
      %p29 = scmp.ne.s32.totalorder %s24, %s26
      %p30 = scmp.eq.s32.totalorder %s16, 0
      %p31 = por %p29, %p30
      %p32 = scmp.ne.s32.totalorder %s24, %s26
      %p33 = scmp.eq.s32.totalorder %s21, 1
      %p34 = por %p32, %p33
      %p35 = scmp.ne.s32.totalorder %s26, %s27
      %p36 = scmp.eq.s32.totalorder %s21, 0
      %p37 = por %p35, %p36
      %p38 = scmp.ne.s32.totalorder %s26, %s27
      %p39 = scmp.eq.s32.totalorder %s22, 1
      %p40 = por %p38, %p39
      %p42 = scmp.ne.s32.totalorder %s27, %s41
      %p43 = scmp.eq.s32.totalorder %s22, 0
      %p44 = por %p42, %p43
      %s46 = sadd.s32 %s45, 1
      %p49 = scmp.eq.s32.totalorder %s16, 1
      %p50 = scmp.ne.s32.totalorder %s45, %s47
      %p51 = scmp.eq.s32.totalorder %s16, 0
      %p52 = por %p50, %p51
      %p53 = scmp.ne.s32.totalorder %s45, %s47
      %p54 = scmp.eq.s32.totalorder %s21, 1
      %p55 = por %p53, %p54
      %p56 = scmp.ne.s32.totalorder %s47, %s48
      %p57 = scmp.eq.s32.totalorder %s21, 0
      %p58 = por %p56, %p57
      %p59 = scmp.ne.s32.totalorder %s47, %s48
      %p60 = scmp.eq.s32.totalorder %s22, 1
      %p61 = por %p59, %p60
      %p63 = scmp.ne.s32.totalorder %s48, %s62
      %p64 = scmp.eq.s32.totalorder %s22, 0
      %p65 = por %p63, %p64
      %s67 = sadd.s32 %s66, 1
      %p70 = scmp.eq.s32.totalorder %s16, 1
      %p71 = scmp.ne.s32.totalorder %s66, %s68
      %p72 = scmp.eq.s32.totalorder %s16, 0
      %p73 = por %p71, %p72
      %p74 = scmp.ne.s32.totalorder %s66, %s68
      %p75 = scmp.eq.s32.totalorder %s21, 1
      %p76 = por %p74, %p75
      %p77 = scmp.ne.s32.totalorder %s68, %s69
      %p78 = scmp.eq.s32.totalorder %s21, 0
      %p79 = por %p77, %p78
      %p80 = scmp.ne.s32.totalorder %s68, %s69
      %p81 = scmp.eq.s32.totalorder %s22, 1
      %p82 = por %p80, %p81
      %p84 = scmp.ne.s32.totalorder %s69, %s83
      %p85 = scmp.eq.s32.totalorder %s22, 0
      %p86 = por %p84, %p85
      %s88 = sadd.s32 %s87, 1
      %p91 = scmp.eq.s32.totalorder %s16, 1
      %p92 = scmp.ne.s32.totalorder %s87, %s89
      %p93 = scmp.eq.s32.totalorder %s16, 0
      %p94 = por %p92, %p93
      %p95 = scmp.ne.s32.totalorder %s87, %s89
      %p96 = scmp.eq.s32.totalorder %s21, 1
      %p97 = por %p95, %p96
      %p98 = scmp.ne.s32.totalorder %s89, %s90
      %p99 = scmp.eq.s32.totalorder %s21, 0
      %p100 = por %p98, %p99
      %p101 = scmp.ne.s32.totalorder %s89, %s90
      %p102 = scmp.eq.s32.totalorder %s22, 1
      %p103 = por %p101, %p102
      %p105 = scmp.ne.s32.totalorder %s90, %s104
      %p106 = scmp.eq.s32.totalorder %s22, 0
      %p107 = por %p105, %p106
      %s109 = sadd.s32 %s108, 1
      %p112 = scmp.eq.s32.totalorder %s16, 1
      %p113 = scmp.ne.s32.totalorder %s108, %s110
      %p114 = scmp.eq.s32.totalorder %s16, 0
      %p115 = por %p113, %p114
      %p116 = scmp.ne.s32.totalorder %s108, %s110
      %p117 = scmp.eq.s32.totalorder %s21, 1
      %p118 = por %p116, %p117
      %p119 = scmp.ne.s32.totalorder %s110, %s111
      %p120 = scmp.eq.s32.totalorder %s21, 0
      %p121 = por %p119, %p120
      %p122 = scmp.ne.s32.totalorder %s110, %s111
      %p123 = scmp.eq.s32.totalorder %s22, 1
      %p124 = por %p122, %p123
      %p126 = scmp.ne.s32.totalorder %s111, %s125
      %p127 = scmp.eq.s32.totalorder %s22, 0
      %p128 = por %p126, %p127
      %s130 = sadd.s32 %s129, 1
      %p133 = scmp.eq.s32.totalorder %s16, 1
      %p134 = scmp.ne.s32.totalorder %s129, %s131
      %p135 = scmp.eq.s32.totalorder %s16, 0
      %p136 = por %p134, %p135
      %p137 = scmp.ne.s32.totalorder %s129, %s131
      %p138 = scmp.eq.s32.totalorder %s21, 1
      %p139 = por %p137, %p138
      %p140 = scmp.ne.s32.totalorder %s131, %s132
      %p141 = scmp.eq.s32.totalorder %s21, 0
      %p142 = por %p140, %p141
      %p143 = scmp.ne.s32.totalorder %s131, %s132
      %p144 = scmp.eq.s32.totalorder %s22, 1
      %p145 = por %p143, %p144
      %p147 = scmp.ne.s32.totalorder %s132, %s146
      %p148 = scmp.eq.s32.totalorder %s22, 0
      %p149 = por %p147, %p148
      %s151 = sadd.s32 %s150, 1
      %p154 = scmp.eq.s32.totalorder %s16, 1
      %p155 = scmp.ne.s32.totalorder %s150, %s152
      %p156 = scmp.eq.s32.totalorder %s16, 0
      %p157 = por %p155, %p156
      %p158 = scmp.ne.s32.totalorder %s150, %s152
      %p159 = scmp.eq.s32.totalorder %s21, 1
      %p160 = por %p158, %p159
      %p161 = scmp.ne.s32.totalorder %s152, %s153
      %p162 = scmp.eq.s32.totalorder %s21, 0
      %p163 = por %p161, %p162
      %p164 = scmp.ne.s32.totalorder %s152, %s153
      %p165 = scmp.eq.s32.totalorder %s22, 1
      %p166 = por %p164, %p165
      %p168 = scmp.ne.s32.totalorder %s153, %s167
      %p169 = scmp.eq.s32.totalorder %s22, 0
      %p170 = por %p168, %p169
      %s172 = sadd.s32 %s171, 1
      %p175 = scmp.eq.s32.totalorder %s16, 1
      %p176 = scmp.ne.s32.totalorder %s171, %s173
      %p177 = scmp.eq.s32.totalorder %s16, 0
      %p178 = por %p176, %p177
      %p179 = scmp.ne.s32.totalorder %s171, %s173
      %p180 = scmp.eq.s32.totalorder %s21, 1
      %p181 = por %p179, %p180
      %p182 = scmp.ne.s32.totalorder %s173, %s174
      %p183 = scmp.eq.s32.totalorder %s21, 0
      %p184 = por %p182, %p183
      %p185 = scmp.ne.s32.totalorder %s173, %s174
      %p186 = scmp.eq.s32.totalorder %s22, 1
      %p187 = por %p185, %p186
      %p189 = scmp.ne.s32.totalorder %s174, %s188
      %p190 = scmp.eq.s32.totalorder %s22, 0
      %p191 = por %p189, %p190
      %s193 = sadd.s32 %s192, 1
      %p196 = scmp.eq.s32.totalorder %s16, 1
      %p197 = scmp.ne.s32.totalorder %s192, %s194
      %p198 = scmp.eq.s32.totalorder %s16, 0
      %p199 = por %p197, %p198
      %p200 = scmp.ne.s32.totalorder %s192, %s194
      %p201 = scmp.eq.s32.totalorder %s21, 1
      %p202 = por %p200, %p201
      %p203 = scmp.ne.s32.totalorder %s194, %s195
      %p204 = scmp.eq.s32.totalorder %s21, 0
      %p205 = por %p203, %p204
      %p206 = scmp.ne.s32.totalorder %s194, %s195
      %p207 = scmp.eq.s32.totalorder %s22, 1
      %p208 = por %p206, %p207
      %p210 = scmp.ne.s32.totalorder %s195, %s209
      %p211 = scmp.eq.s32.totalorder %s22, 0
      %p212 = por %p210, %p211
      %p213 = scmp.le.s32.totalorder 1, %s16
      %p214 = scmp.lt.s32.totalorder %s16, 3
      %p215 = pnand %p213, %p214
      %p216 = pneg %p215
      // Predicated region
      $region9: #{tpu_custom_call.1} parent=5 // pred_check
        _
      $region10: #{tpu_custom_call.1} parent=5 // pred_check_branch
        %218 = sbr.rel (%p215) target = $region12
      $region11: #{tpu_custom_call.1} parent=5 // pred_region
        %s219 = ssub.s32 %s16, 1
        // Predicated region
        $region13: #{tpu_custom_call.1} parent=11 // pred_check
          %p220 = pneg %p37
        $region14: #{tpu_custom_call.1} parent=11 // pred_check_branch
          %222 = sbr.rel (%p220) target = $region16
        $region15: #{tpu_custom_call.1} parent=11 // pred_region
          _
        $region16: #{tpu_custom_call.1} parent=11 // pred_fallthru
          _
        // Predicated region
        $region17: #{tpu_custom_call.1} parent=11 // pred_check
          %p223 = pneg %p58
        $region18: #{tpu_custom_call.1} parent=11 // pred_check_branch
          %225 = sbr.rel (%p223) target = $region20
        $region19: #{tpu_custom_call.1} parent=11 // pred_region
          _
        $region20: #{tpu_custom_call.1} parent=11 // pred_fallthru
          _
        // Predicated region
        $region21: #{tpu_custom_call.1} parent=11 // pred_check
          %p226 = pneg %p79
        $region22: #{tpu_custom_call.1} parent=11 // pred_check_branch
          %228 = sbr.rel (%p226) target = $region24
        $region23: #{tpu_custom_call.1} parent=11 // pred_region
          _
        $region24: #{tpu_custom_call.1} parent=11 // pred_fallthru
          _
        // Predicated region
        $region25: #{tpu_custom_call.1} parent=11 // pred_check
          %p229 = pneg %p100
        $region26: #{tpu_custom_call.1} parent=11 // pred_check_branch
          %231 = sbr.rel (%p229) target = $region28
        $region27: #{tpu_custom_call.1} parent=11 // pred_region
          _
        $region28: #{tpu_custom_call.1} parent=11 // pred_fallthru
          _
        // Predicated region
        $region29: #{tpu_custom_call.1} parent=11 // pred_check
          %p232 = pneg %p121
        $region30: #{tpu_custom_call.1} parent=11 // pred_check_branch
          %234 = sbr.rel (%p232) target = $region32
        $region31: #{tpu_custom_call.1} parent=11 // pred_region
          _
        $region32: #{tpu_custom_call.1} parent=11 // pred_fallthru
          _
        // Predicated region
        $region33: #{tpu_custom_call.1} parent=11 // pred_check
          %p235 = pneg %p142
        $region34: #{tpu_custom_call.1} parent=11 // pred_check_branch
          %237 = sbr.rel (%p235) target = $region36
        $region35: #{tpu_custom_call.1} parent=11 // pred_region
          _
        $region36: #{tpu_custom_call.1} parent=11 // pred_fallthru
          _
        // Predicated region
        $region37: #{tpu_custom_call.1} parent=11 // pred_check
          %p238 = pneg %p163
        $region38: #{tpu_custom_call.1} parent=11 // pred_check_branch
          %240 = sbr.rel (%p238) target = $region40
        $region39: #{tpu_custom_call.1} parent=11 // pred_region
          %s242 = ssub.s32 2048, 2048
          %243 = vsyncadd [#allocation5], %s242
          %s244 = sshll.u32 [#allocation4], 4
          %s245 = int_to_ptr.vmem [resolvable:$true] %s244
          %250 = dma.hbm_to_vmem [thread:$0]  %s6, 2048, %s245, [#allocation5], 128, 128, 8
        $region40: #{tpu_custom_call.1} parent=11 // pred_fallthru
          _
        // Predicated region
        $region41: #{tpu_custom_call.1} parent=11 // pred_check
          %p251 = pneg %p184
        $region42: #{tpu_custom_call.1} parent=11 // pred_check_branch
          %253 = sbr.rel (%p251) target = $region44
        $region43: #{tpu_custom_call.1} parent=11 // pred_region
          _
        $region44: #{tpu_custom_call.1} parent=11 // pred_fallthru
          _
      $region12: #{tpu_custom_call.1} parent=5 // pred_fallthru
        _
      %p254 = scmp.lt.s32.totalorder %s16, 2
      // Predicated region
      $region45: #{tpu_custom_call.1} parent=5 // pred_check
        %p255 = pneg %p254
      $region46: #{tpu_custom_call.1} parent=5 // pred_check_branch
        %257 = sbr.rel (%p255) target = $region48
      $region47: #{tpu_custom_call.1} parent=5 // pred_region
        _
      $region48: #{tpu_custom_call.1} parent=5 // pred_fallthru
        _
      %p258 = scmp.le.s32.totalorder 1, %s16
      %p259 = scmp.lt.s32.totalorder %s16, 3
      %p260 = pnand %p258, %p259
      %p261 = pneg %p260
      // Predicated region
      $region49: #{tpu_custom_call.1} parent=5 // pred_check
        _
      $region50: #{tpu_custom_call.1} parent=5 // pred_check_branch
        %263 = sbr.rel (%p260) target = $region52
      $region51: #{tpu_custom_call.1} parent=5 // pred_region
        %s264 = ssub.s32 %s16, 1
        // Predicated region
        $region53: #{tpu_custom_call.1} parent=51 // pred_check
          %p265 = pneg %p163
        $region54: #{tpu_custom_call.1} parent=51 // pred_check_branch
          %267 = sbr.rel (%p265) target = $region56
        $region55: #{tpu_custom_call.1} parent=51 // pred_region
          %268 = dma.done [#allocation5], 2048
        $region56: #{tpu_custom_call.1} parent=51 // pred_fallthru
          _
        %p269 = pneg %p37
        %p270 = pneg %p34
        %p271 = pneg %p58
        %p272 = pneg %p55
        %p273 = pneg %p79
        %p274 = pneg %p76
        %p275 = pneg %p100
        %p276 = pneg %p97
        %p277 = pneg %p121
        %p278 = pneg %p118
        %p279 = pneg %p142
        %p280 = pneg %p139
        %p281 = pneg %p163
        %p282 = pneg %p160
        %p283 = pneg %p184
        %p284 = pneg %p181
        %p285 = pneg %p205
        %p286 = pneg %p202
        %p287 = scmp.eq.s32.totalorder %s21, 1
        %p288 = scmp.eq.s32.totalorder %s21, 0
        // Predicated region
        $region57: #{tpu_custom_call.1} parent=51 // pred_check
          %p289 = pneg %p288
        $region58: #{tpu_custom_call.1} parent=51 // pred_check_branch
          %291 = sbr.rel (%p289) target = $region60
        $region59: #{tpu_custom_call.1} parent=51 // pred_region
          %v292 = vld [vmem:[%s1] sm:$0xff]
          %v293 = vld [vmem:[%s1 + $0x8] sm:$0xff]
          %v294 = vld [vmem:[%s1 + $0x10] sm:$0xff]
          %v295 = vld [vmem:[%s4] sm:$0xff]
          %v296 = vld [vmem:[%s5] sm:$0x1]
          %v298 = vlaneseq
          %v299 = vshrl.u32 %v298, 7
          %v300 = vsub.s32 0, %v299
          %v301 = vrot.slane %v296, %v300
          %vm303 = vcmask 64512
          %v305 = vsel %vm303, %v292, 0
          %v308 = vsel %vm303, %v293, 0
          %v311 = vsel %vm303, %v294, 0
          %313 = vmatprep.subr.mxu0 0.0
          %314 = vmatpush1.msra.mxu0 %v295
          %315 = vmatprep.subr.mxu0 0.0
          %316 = vmatpush1.msra.mxu0 0.0
          %317 = vmatprep.subr.mxu0 0.0
          %318 = vmatpush1.msra.mxu0 0.0
          %319 = vmatprep.subr.mxu0 0.0
          %320 = vmatpush1.msra.mxu0 0.0
          %321 = vmatprep.subr.mxu0 0.0
          %322 = vmatpush1.msra.mxu0 0.0
          %323 = vmatprep.subr.mxu0 0.0
          %324 = vmatpush1.msra.mxu0 0.0
          %325 = vmatprep.subr.mxu0 0.0
          %326 = vmatpush1.msra.mxu0 0.0
          %327 = vmatprep.subr.mxu0 0.0
          %328 = vmatpush1.msra.mxu0 0.0
          %329 = vmatprep.subr.mxu0 0.0
          %330 = vmatpush1.msra.mxu0 0.0
          %331 = vmatprep.subr.mxu0 0.0
          %332 = vmatpush1.msra.mxu0 0.0
          %333 = vmatprep.subr.mxu0 0.0
          %334 = vmatpush1.msra.mxu0 0.0
          %335 = vmatprep.subr.mxu0 0.0
          %336 = vmatpush1.msra.mxu0 0.0
          %337 = vmatprep.subr.mxu0 0.0
          %338 = vmatpush1.msra.mxu0 0.0
          %339 = vmatprep.subr.mxu0 0.0
          %340 = vmatpush1.msra.mxu0 0.0
          %341 = vmatprep.subr.mxu0 0.0
          %342 = vmatpush1.msra.mxu0 0.0
          %343 = vmatprep.subr.mxu0 0.0
          %344 = vmatpush1.msra.mxu0 0.0
          %345 = vmatprep.subr.mxu0 0.0
          %346 = vmatpush1.msra.mxu0 0.0
          %347 = vmatprep.subr.mxu0 0.0
          %348 = vmatpush1.msra.mxu0 0.0
          %349 = vmatprep.subr.mxu0 0.0
          %350 = vmatpush1.msra.mxu0 0.0
          %351 = vmatprep.subr.mxu0 0.0
          %352 = vmatpush1.msra.mxu0 0.0
          %353 = vmatprep.subr.mxu0 0.0
          %354 = vmatpush1.msra.mxu0 0.0
          %355 = vmatprep.subr.mxu0 0.0
          %356 = vmatpush1.msra.mxu0 0.0
          %357 = vmatprep.subr.mxu0 0.0
          %358 = vmatpush1.msra.mxu0 0.0
          %359 = vmatprep.subr.mxu0 0.0
          %360 = vmatpush1.msra.mxu0 0.0
          %361 = vmatprep.subr.mxu0 0.0
          %362 = vmatpush1.msra.mxu0 0.0
          %363 = vmatprep.subr.mxu0 0.0
          %364 = vmatpush1.msra.mxu0 0.0
          %365 = vmatprep.subr.mxu0 0.0
          %366 = vmatpush1.msra.mxu0 0.0
          %367 = vmatprep.subr.mxu0 0.0
          %368 = vmatpush1.msra.mxu0 0.0
          %369 = vmatprep.subr.mxu0 0.0
          %370 = vmatpush1.msra.mxu0 0.0
          %371 = vmatprep.subr.mxu0 0.0
          %372 = vmatpush1.msra.mxu0 0.0
          %373 = vmatprep.subr.mxu0 0.0
          %374 = vmatpush1.msra.mxu0 0.0
          %375 = vmatprep.subr.mxu0 0.0
          %376 = vmatpush1.msra.mxu0 0.0
          %377 = vmatprep.mubr.f32.mxu0 0.0
          %378 = vmatmul.mubr.f32.gmra.mrb[0].mxu0 %v305
          %v379 = vpop.f32.mrb[0].mxu0
          %v380 = vadd.f32 %v301, %v379
          %v381 = vpop.f32.mrb[0].mxu0
          %382 = vmatprep.mubr.f32.mxu0 0.0
          %383 = vmatmul.mubr.f32.gmra.mrb[0].mxu0 %v308
          %v384 = vpop.f32.mrb[0].mxu0
          %v385 = vadd.f32 %v301, %v384
          %v386 = vpop.f32.mrb[0].mxu0
          %387 = vmatprep.mubr.f32.mxu0 0.0
          %388 = vmatmul.mubr.f32.gmra.mrb[0].mxu0 %v311
          %v389 = vpop.f32.mrb[0].mxu0
          %v390 = vadd.f32 %v301, %v389
          %v391 = vpop.f32.mrb[0].mxu0
          %392 = vdwg.mxu0
          %393 = vst [vmem:[#allocation3] sm:$0xff] %v380
          %394 = vst [vmem:[#allocation3 + $0x8] sm:$0xff] %v385
          %395 = vst [vmem:[#allocation3 + $0x10] sm:$0xff] %v390
          %v396 = vld [vmem:[%s0] sm:$0xff]
          %v397 = vld [vmem:[%s0 + $0x8] sm:$0xff]
          %398 = vst [vmem:[#allocation2] sm:$0xff] %v396
          %399 = vst [vmem:[#allocation2 + $0x8] sm:$0xff] %v397
        $region60: #{tpu_custom_call.1} parent=51 // pred_fallthru
          _
        %v400 = vld [vmem:[#allocation2] sm:$0xff]
        %v401 = vld [vmem:[#allocation2 + $0x8] sm:$0xff]
        %v402 = vld [vmem:[%s2] sm:$0xf]
        %v403 = vld [vmem:[%s2 + $0x4] sm:$0xf]
        %v404 = vld [vmem:[%s2 + $0x8] sm:$0xf]
        %v405 = vunpack.c.l.bf16 %v402
        %v406 = vunpack.c.l.bf16 %v403
        %v407 = vunpack.c.l.bf16 %v404
        %v408 = vld [vmem:[%s3] sm:$0xf]
        %v409 = vld [vmem:[%s3 + $0x4] sm:$0xf]
        %v410 = vld [vmem:[%s3 + $0x8] sm:$0xf]
        %v411 = vunpack.c.l.bf16 %v408
        %v412 = vunpack.c.l.bf16 %v409
        %v413 = vunpack.c.l.bf16 %v410
        %v414 = vld [vmem:[#allocation3] sm:$0xff]
        %v415 = vld [vmem:[#allocation3 + $0x8] sm:$0xff]
        %v416 = vld [vmem:[#allocation3 + $0x10] sm:$0xff]
        %vm417 = vcmask 130048
        %v419 = vsel %vm417, %v405, 0
        %v422 = vsel %vm417, %v406, 0
        %v425 = vsel %vm417, %v407, 0
        %427 = vmatprep.subr.mxu0 0.0
        %428 = vmatpush1.msra.mxu0 %v400
        %429 = vmatprep.subr.mxu0 0.0
        %430 = vmatpush1.msra.mxu0 %v401
        %431 = vmatprep.subr.mxu0 0.0
        %432 = vmatpush1.msra.mxu0 0.0
        %433 = vmatprep.subr.mxu0 0.0
        %434 = vmatpush1.msra.mxu0 0.0
        %435 = vmatprep.subr.mxu0 0.0
        %436 = vmatpush1.msra.mxu0 0.0
        %437 = vmatprep.subr.mxu0 0.0
        %438 = vmatpush1.msra.mxu0 0.0
        %439 = vmatprep.subr.mxu0 0.0
        %440 = vmatpush1.msra.mxu0 0.0
        %441 = vmatprep.subr.mxu0 0.0
        %442 = vmatpush1.msra.mxu0 0.0
        %443 = vmatprep.subr.mxu0 0.0
        %444 = vmatpush1.msra.mxu0 0.0
        %445 = vmatprep.subr.mxu0 0.0
        %446 = vmatpush1.msra.mxu0 0.0
        %447 = vmatprep.subr.mxu0 0.0
        %448 = vmatpush1.msra.mxu0 0.0
        %449 = vmatprep.subr.mxu0 0.0
        %450 = vmatpush1.msra.mxu0 0.0
        %451 = vmatprep.subr.mxu0 0.0
        %452 = vmatpush1.msra.mxu0 0.0
        %453 = vmatprep.subr.mxu0 0.0
        %454 = vmatpush1.msra.mxu0 0.0
        %455 = vmatprep.subr.mxu0 0.0
        %456 = vmatpush1.msra.mxu0 0.0
        %457 = vmatprep.subr.mxu0 0.0
        %458 = vmatpush1.msra.mxu0 0.0
        %459 = vmatprep.subr.mxu0 0.0
        %460 = vmatpush1.msra.mxu0 0.0
        %461 = vmatprep.subr.mxu0 0.0
        %462 = vmatpush1.msra.mxu0 0.0
        %463 = vmatprep.subr.mxu0 0.0
        %464 = vmatpush1.msra.mxu0 0.0
        %465 = vmatprep.subr.mxu0 0.0
        %466 = vmatpush1.msra.mxu0 0.0
        %467 = vmatprep.subr.mxu0 0.0
        %468 = vmatpush1.msra.mxu0 0.0
        %469 = vmatprep.subr.mxu0 0.0
        %470 = vmatpush1.msra.mxu0 0.0
        %471 = vmatprep.subr.mxu0 0.0
        %472 = vmatpush1.msra.mxu0 0.0
        %473 = vmatprep.subr.mxu0 0.0
        %474 = vmatpush1.msra.mxu0 0.0
        %475 = vmatprep.subr.mxu0 0.0
        %476 = vmatpush1.msra.mxu0 0.0
        %477 = vmatprep.subr.mxu0 0.0
        %478 = vmatpush1.msra.mxu0 0.0
        %479 = vmatprep.subr.mxu0 0.0
        %480 = vmatpush1.msra.mxu0 0.0
        %481 = vmatprep.subr.mxu0 0.0
        %482 = vmatpush1.msra.mxu0 0.0
        %483 = vmatprep.subr.mxu0 0.0
        %484 = vmatpush1.msra.mxu0 0.0
        %485 = vmatprep.subr.mxu0 0.0
        %486 = vmatpush1.msra.mxu0 0.0
        %487 = vmatprep.subr.mxu0 0.0
        %488 = vmatpush1.msra.mxu0 0.0
        %489 = vmatprep.subr.mxu0 0.0
        %490 = vmatpush1.msra.mxu0 0.0
        %491 = vmatprep.mubr.f32.mxu0 0.0
        %492 = vmatmul.mubr.f32.gmra.mrb[0].mxu0 %v419
        %v493 = vpop.f32.mrb[0].mxu0
        %v494 = vadd.f32 %v414, %v493
        %v495 = vpop.f32.mrb[0].mxu0
        %496 = vmatprep.mubr.f32.mxu0 0.0
        %497 = vmatmul.mubr.f32.gmra.mrb[0].mxu0 %v422
        %v498 = vpop.f32.mrb[0].mxu0
        %v499 = vadd.f32 %v415, %v498
        %v500 = vpop.f32.mrb[0].mxu0
        %501 = vmatprep.mubr.f32.mxu0 0.0
        %502 = vmatmul.mubr.f32.gmra.mrb[0].mxu0 %v425
        %v503 = vpop.f32.mrb[0].mxu0
        %v504 = vadd.f32 %v416, %v503
        %v505 = vpop.f32.mrb[0].mxu0
        %506 = vdwg.mxu0
        %v507 = vmax.f32 %v494, 0.0
        %v508 = vmax.f32 %v499, 0.0
        %v509 = vmax.f32 %v504, 0.0
        %510 = vxpose.xlu0.b32.start [1/16] %v411, 128
        %511 = vxpose.xlu0.b32.cont [2/16] %v412, 128
        %512 = vxpose.xlu0.b32.cont [3/16] %v413, 128
        %513 = vxpose.xlu0.b32.cont [4/16] 0.0, 128
        %514 = vxpose.xlu0.b32.cont [5/16] 0.0, 128
        %515 = vxpose.xlu0.b32.cont [6/16] 0.0, 128
        %516 = vxpose.xlu0.b32.cont [7/16] 0.0, 128
        %517 = vxpose.xlu0.b32.cont [8/16] 0.0, 128
        %518 = vxpose.xlu0.b32.cont [9/16] 0.0, 128
        %519 = vxpose.xlu0.b32.cont [10/16] 0.0, 128
        %520 = vxpose.xlu0.b32.cont [11/16] 0.0, 128
        %521 = vxpose.xlu0.b32.cont [12/16] 0.0, 128
        %522 = vxpose.xlu0.b32.cont [13/16] 0.0, 128
        %523 = vxpose.xlu0.b32.cont [14/16] 0.0, 128
        %524 = vxpose.xlu0.b32.cont [15/16] 0.0, 128
        %525 = vxpose.xlu0.b32.end [16/16] 0.0, 128
        %v526 = vpop.trf.xlu0
        %v527 = vpop.trf.xlu0
        %v528 = vpop.trf.xlu0
        %v529 = vpop.trf.xlu0
        %v530 = vpop.trf.xlu0
        %v531 = vpop.trf.xlu0
        %v532 = vpop.trf.xlu0
        %v533 = vpop.trf.xlu0
        %v534 = vpop.trf.xlu0
        %v535 = vpop.trf.xlu0
        %v536 = vpop.trf.xlu0
        %v537 = vpop.trf.xlu0
        %v538 = vpop.trf.xlu0
        %v539 = vpop.trf.xlu0
        %v540 = vpop.trf.xlu0
        %v541 = vpop.trf.xlu0
        %vm542 = vcmask 195584
        %v544 = vsel %vm542, %v526, 0
        %v547 = vsel %vm542, %v527, 0
        %549 = vmatprep.subr.mxu0 0.0
        %550 = vmatpush1.msra.mxu0 %v507
        %551 = vmatprep.subr.mxu0 0.0
        %552 = vmatpush1.msra.mxu0 %v508
        %553 = vmatprep.subr.mxu0 0.0
        %554 = vmatpush1.msra.mxu0 %v509
        %555 = vmatprep.subr.mxu0 0.0
        %556 = vmatpush1.msra.mxu0 0.0
        %557 = vmatprep.subr.mxu0 0.0
        %558 = vmatpush1.msra.mxu0 0.0
        %559 = vmatprep.subr.mxu0 0.0
        %560 = vmatpush1.msra.mxu0 0.0
        %561 = vmatprep.subr.mxu0 0.0
        %562 = vmatpush1.msra.mxu0 0.0
        %563 = vmatprep.subr.mxu0 0.0
        %564 = vmatpush1.msra.mxu0 0.0
        %565 = vmatprep.subr.mxu0 0.0
        %566 = vmatpush1.msra.mxu0 0.0
        %567 = vmatprep.subr.mxu0 0.0
        %568 = vmatpush1.msra.mxu0 0.0
        %569 = vmatprep.subr.mxu0 0.0
        %570 = vmatpush1.msra.mxu0 0.0
        %571 = vmatprep.subr.mxu0 0.0
        %572 = vmatpush1.msra.mxu0 0.0
        %573 = vmatprep.subr.mxu0 0.0
        %574 = vmatpush1.msra.mxu0 0.0
        %575 = vmatprep.subr.mxu0 0.0
        %576 = vmatpush1.msra.mxu0 0.0
        %577 = vmatprep.subr.mxu0 0.0
        %578 = vmatpush1.msra.mxu0 0.0
        %579 = vmatprep.subr.mxu0 0.0
        %580 = vmatpush1.msra.mxu0 0.0
        %581 = vmatprep.subr.mxu0 0.0
        %582 = vmatpush1.msra.mxu0 0.0
        %583 = vmatprep.subr.mxu0 0.0
        %584 = vmatpush1.msra.mxu0 0.0
        %585 = vmatprep.subr.mxu0 0.0
        %586 = vmatpush1.msra.mxu0 0.0
        %587 = vmatprep.subr.mxu0 0.0
        %588 = vmatpush1.msra.mxu0 0.0
        %589 = vmatprep.subr.mxu0 0.0
        %590 = vmatpush1.msra.mxu0 0.0
        %591 = vmatprep.subr.mxu0 0.0
        %592 = vmatpush1.msra.mxu0 0.0
        %593 = vmatprep.subr.mxu0 0.0
        %594 = vmatpush1.msra.mxu0 0.0
        %595 = vmatprep.subr.mxu0 0.0
        %596 = vmatpush1.msra.mxu0 0.0
        %597 = vmatprep.subr.mxu0 0.0
        %598 = vmatpush1.msra.mxu0 0.0
        %599 = vmatprep.subr.mxu0 0.0
        %600 = vmatpush1.msra.mxu0 0.0
        %601 = vmatprep.subr.mxu0 0.0
        %602 = vmatpush1.msra.mxu0 0.0
        %603 = vmatprep.subr.mxu0 0.0
        %604 = vmatpush1.msra.mxu0 0.0
        %605 = vmatprep.subr.mxu0 0.0
        %606 = vmatpush1.msra.mxu0 0.0
        %607 = vmatprep.subr.mxu0 0.0
        %608 = vmatpush1.msra.mxu0 0.0
        %609 = vmatprep.subr.mxu0 0.0
        %610 = vmatpush1.msra.mxu0 0.0
        %611 = vmatprep.subr.mxu0 0.0
        %612 = vmatpush1.msra.mxu0 0.0
        %613 = vmatprep.mubr.f32.mxu0 0.0
        %614 = vmatmul.mubr.f32.gmra.mrb[0].mxu0 %v544
        %v615 = vpop.f32.mrb[0].mxu0
        %v616 = vadd.f32 0.0, %v615
        %v617 = vpop.f32.mrb[0].mxu0
        %618 = vmatprep.mubr.f32.mxu0 0.0
        %619 = vmatmul.mubr.f32.gmra.mrb[0].mxu0 %v547
        %v620 = vpop.f32.mrb[0].mxu0
        %v621 = vadd.f32 0.0, %v620
        %v622 = vpop.f32.mrb[0].mxu0
        %623 = vdwg.mxu0
        %v624 = vadd.f32 %v400, %v616
        %v625 = vadd.f32 %v401, %v621
        %v626 = vld [vmem:[#allocation4] sm:$0xff]
        %v627 = vld [vmem:[#allocation4 + $0x8] sm:$0xff]
        %v628 = vld [vmem:[#allocation4 + $0x10] sm:$0xff]
        %v629 = vld [vmem:[#allocation4 + $0x18] sm:$0xff]
        %v630 = vld [vmem:[#allocation4 + $0x20] sm:$0xff]
        %v631 = vld [vmem:[#allocation4 + $0x28] sm:$0xff]
        %v632 = vld [vmem:[#allocation4 + $0x30] sm:$0xff]
        %v633 = vld [vmem:[#allocation4 + $0x38] sm:$0xff]
        %v634 = vld [vmem:[#allocation4 + $0x40] sm:$0xff]
        %v635 = vld [vmem:[#allocation4 + $0x48] sm:$0xff]
        %v636 = vld [vmem:[#allocation4 + $0x50] sm:$0xff]
        %v637 = vld [vmem:[#allocation4 + $0x58] sm:$0xff]
        %v638 = vld [vmem:[#allocation4 + $0x60] sm:$0xff]
        %v639 = vld [vmem:[#allocation4 + $0x68] sm:$0xff]
        %v640 = vld [vmem:[#allocation4 + $0x70] sm:$0xff]
        %v641 = vld [vmem:[#allocation4 + $0x78] sm:$0xff]
        %v642 = vld [vmem:[%s7] sm:$0x1]
        %v644 = vlaneseq
        %v645 = vshrl.u32 %v644, 7
        %v646 = vsub.s32 0, %v645
        %v647 = vrot.slane %v642, %v646
        %649 = vmatprep.subr.mxu0 0.0
        %650 = vmatpush1.msra.mxu0 %v626
        %651 = vmatprep.subr.mxu0 0.0
        %652 = vmatpush1.msra.mxu0 %v627
        %653 = vmatprep.subr.mxu0 0.0
        %654 = vmatpush1.msra.mxu0 %v628
        %655 = vmatprep.subr.mxu0 0.0
        %656 = vmatpush1.msra.mxu0 %v629
        %657 = vmatprep.subr.mxu0 0.0
        %658 = vmatpush1.msra.mxu0 %v630
        %659 = vmatprep.subr.mxu0 0.0
        %660 = vmatpush1.msra.mxu0 %v631
        %661 = vmatprep.subr.mxu0 0.0
        %662 = vmatpush1.msra.mxu0 %v632
        %663 = vmatprep.subr.mxu0 0.0
        %664 = vmatpush1.msra.mxu0 %v633
        %665 = vmatprep.subr.mxu0 0.0
        %666 = vmatpush1.msra.mxu0 %v634
        %667 = vmatprep.subr.mxu0 0.0
        %668 = vmatpush1.msra.mxu0 %v635
        %669 = vmatprep.subr.mxu0 0.0
        %670 = vmatpush1.msra.mxu0 %v636
        %671 = vmatprep.subr.mxu0 0.0
        %672 = vmatpush1.msra.mxu0 %v637
        %673 = vmatprep.subr.mxu0 0.0
        %674 = vmatpush1.msra.mxu0 %v638
        %675 = vmatprep.subr.mxu0 0.0
        %676 = vmatpush1.msra.mxu0 %v639
        %677 = vmatprep.subr.mxu0 0.0
        %678 = vmatpush1.msra.mxu0 %v640
        %679 = vmatprep.subr.mxu0 0.0
        %680 = vmatpush1.msra.mxu0 %v641
        %681 = vmatprep.subr.mxu0 0.0
        %682 = vmatpush1.msra.mxu0 0.0
        %683 = vmatprep.subr.mxu0 0.0
        %684 = vmatpush1.msra.mxu0 0.0
        %685 = vmatprep.subr.mxu0 0.0
        %686 = vmatpush1.msra.mxu0 0.0
        %687 = vmatprep.subr.mxu0 0.0
        %688 = vmatpush1.msra.mxu0 0.0
        %689 = vmatprep.subr.mxu0 0.0
        %690 = vmatpush1.msra.mxu0 0.0
        %691 = vmatprep.subr.mxu0 0.0
        %692 = vmatpush1.msra.mxu0 0.0
        %693 = vmatprep.subr.mxu0 0.0
        %694 = vmatpush1.msra.mxu0 0.0
        %695 = vmatprep.subr.mxu0 0.0
        %696 = vmatpush1.msra.mxu0 0.0
        %697 = vmatprep.subr.mxu0 0.0
        %698 = vmatpush1.msra.mxu0 0.0
        %699 = vmatprep.subr.mxu0 0.0
        %700 = vmatpush1.msra.mxu0 0.0
        %701 = vmatprep.subr.mxu0 0.0
        %702 = vmatpush1.msra.mxu0 0.0
        %703 = vmatprep.subr.mxu0 0.0
        %704 = vmatpush1.msra.mxu0 0.0
        %705 = vmatprep.subr.mxu0 0.0
        %706 = vmatpush1.msra.mxu0 0.0
        %707 = vmatprep.subr.mxu0 0.0
        %708 = vmatpush1.msra.mxu0 0.0
        %709 = vmatprep.subr.mxu0 0.0
        %710 = vmatpush1.msra.mxu0 0.0
        %711 = vmatprep.subr.mxu0 0.0
        %712 = vmatpush1.msra.mxu0 0.0
        %713 = vmatprep.mubr.f32.mxu0 0.0
        %714 = vmatmul.mubr.f32.gmra.mrb[0].mxu0 %v624
        %v715 = vpop.f32.mrb[0].mxu0
        %v716 = vadd.f32 %v647, %v715
        %v717 = vpop.f32.mrb[0].mxu0
        %718 = vmatprep.mubr.f32.mxu0 0.0
        %719 = vmatmul.mubr.f32.gmra.mrb[0].mxu0 %v625
        %v720 = vpop.f32.mrb[0].mxu0
        %v721 = vadd.f32 %v647, %v720
        %v722 = vpop.f32.mrb[0].mxu0
        %723 = vdwg.mxu0
        %v724 = vmax.f32 %v716, 0.0
        %v725 = vmax.f32 %v721, 0.0
        %726 = vst [vmem:[#allocation2] sm:$0xff] %v724
        %727 = vst [vmem:[#allocation2 + $0x8] sm:$0xff] %v725
        // Predicated region
        $region61: #{tpu_custom_call.1} parent=51 // pred_check
          %p728 = pneg %p287
        $region62: #{tpu_custom_call.1} parent=51 // pred_check_branch
          %730 = sbr.rel (%p728) target = $region64
        $region63: #{tpu_custom_call.1} parent=51 // pred_region
          %731 = vst [vmem:[#allocation7] sm:$0xff] %v716
          %732 = vst [vmem:[#allocation7 + $0x8] sm:$0xff] %v721
        $region64: #{tpu_custom_call.1} parent=51 // pred_fallthru
          _
        // Predicated region
        $region65: #{tpu_custom_call.1} parent=51 // pred_check
          %p733 = pneg %p202
        $region66: #{tpu_custom_call.1} parent=51 // pred_check_branch
          %735 = sbr.rel (%p733) target = $region68
        $region67: #{tpu_custom_call.1} parent=51 // pred_region
          %s737 = ssub.s32 256, 256
          %738 = vsyncadd [#allocation6], %s737
          %s739 = sshll.u32 [#allocation7], 4
          %s740 = int_to_ptr.vmem [resolvable:$true] %s739
          %745 = dma.vmem_to_hbm [thread:$0]  %s740, 256, %s8, [#allocation6], 128, 128, 8
        $region68: #{tpu_custom_call.1} parent=51 // pred_fallthru
          _
        // Predicated region
        $region69: #{tpu_custom_call.1} parent=51 // pred_check
          %p746 = pneg %p202
        $region70: #{tpu_custom_call.1} parent=51 // pred_check_branch
          %748 = sbr.rel (%p746) target = $region72
        $region71: #{tpu_custom_call.1} parent=51 // pred_region
          %749 = dma.done [#allocation6], 256
        $region72: #{tpu_custom_call.1} parent=51 // pred_fallthru
          _
      $region52: #{tpu_custom_call.1} parent=5 // pred_fallthru
        _
      %p750 = scmp.le.s32.totalorder 2, %s16
      // Predicated region
      $region73: #{tpu_custom_call.1} parent=5 // pred_check
        %p751 = pneg %p750
      $region74: #{tpu_custom_call.1} parent=5 // pred_check_branch
        %753 = sbr.rel (%p751) target = $region76
      $region75: #{tpu_custom_call.1} parent=5 // pred_region
        %s754 = ssub.s32 %s16, 2
      $region76: #{tpu_custom_call.1} parent=5 // pred_fallthru
        _
    $region6: #{tpu_custom_call.1} parent=1 // loop_footer
      %s20 = sadd.s32 1, %s16
    $region7: #{tpu_custom_call.1} parent=1 // loop_footer_branch
      %15 = sbr.rel target = $region3
    $region8: #{tpu_custom_call.1} parent=1 // loop_exit
      _
    %755 = vsyncpa [#allocation5], 1
    %s756 = scalar_lea.sflag [#allocation5], 1
    %757 = vsyncpa %s756, 1
    %758 = vsyncpa [#allocation6], 1
    %s759 = scalar_lea.sflag [#allocation6], 1
    %760 = vsyncpa %s759, 1

</llo_original>
